<compile_context>
chip_gen: v5e
topology: v5e:2x2
jax: 0.10.0
libtpu: 0.0.40
codegen_flags: <defaults>
</compile_context>

<pallas_src>
import functools
import math

import jax
import jax.numpy as jnp
from jax.experimental import pallas as pl
from jax.experimental.pallas import tpu as pltpu


def _round_up(x, m):
    return ((x + m - 1) // m) * m


# ---------------- parameter-slab layout (f32, one VMEM constant) ----------------
# rows 0:8    cols 0:in_f  -> w1 (8, in_f)        col 32 -> b1
# rows 8:24   cols 0:8     -> w2 (16, 8)          col 32 -> b2
# rows 24:56  cols 0:16    -> w3 (32, 16)         col 32 -> b3
# rows 56:72  cols 0:32    -> w4 (16, 32)         col 32 -> b4
# rows 72:88  col  0       -> w5^T (16, 1)        row 72, col 32 -> b5
_ROW_W1, _ROW_W2, _ROW_W3, _ROW_W4, _ROW_W5T = 0, 8, 24, 56, 72
_P_ROWS = 88
_BIAS_COL = 32
_P_COLS = 33


def _mish(x):
    # Mish(x) = x * tanh(softplus(x)).
    # tanh(log1p(e^x)) == u / (u + 2) with u = e^x * (e^x + 2)  -> single EUP exp.
    # min(x, 20) guards the exp; for x >= 20, u/(u+2) == 1 in f32 so mish(x) == x.
    t = jnp.exp(jnp.minimum(x, 20.0))
    u = t * (t + 2.0)
    return x * u * pl.reciprocal(u + 2.0, approx=True)


def _mlp_kernel(x_ref, p_ref, o_ref):
    f32 = jnp.float32
    bf16 = jnp.bfloat16
    in_f = x_ref.shape[0]

    # ---- layer 1 (in_f -> 8): VPU broadcast-MACs (K=2 dot would be ~0.1% MXU util) ----
    w1 = p_ref[_ROW_W1:_ROW_W1 + 8, 0:in_f]                          # (8, in_f)
    b1 = p_ref[_ROW_W1:_ROW_W1 + 8, _BIAS_COL:_BIAS_COL + 1]         # (8, 1)
    acc = None
    for k in range(in_f):                                            # static unroll
        term = w1[:, k:k + 1] * x_ref[k:k + 1, :].astype(f32)        # (8,1)*(1,blk)
        acc = term if acc is None else acc + term
    h = _mish(acc + b1)                                              # (8, blk) f32

    # ---- layers 2-4: bf16 MXU dots, f32 accumulate ----
    for row, out_f, in_k in ((_ROW_W2, 16, 8), (_ROW_W3, 32, 16), (_ROW_W4, 16, 32)):
        w = p_ref[row:row + out_f, 0:in_k].astype(bf16)              # (out_f, in_k)
        b = p_ref[row:row + out_f, _BIAS_COL:_BIAS_COL + 1]          # (out_f, 1)
        z = jnp.dot(w, h.astype(bf16), preferred_element_type=f32) + b
        h = _mish(z)                                                 # (out_f, blk) f32

    # ---- layer 5 (16 -> 1): VPU multiply + XLU sublane-sum (M=1 dot off the MXU) ----
    w5t = p_ref[_ROW_W5T:_ROW_W5T + 16, 0:1]                         # (16, 1) = w5^T
    b5 = p_ref[_ROW_W5T:_ROW_W5T + 1, _BIAS_COL:_BIAS_COL + 1]       # (1, 1)
    out = jnp.sum(w5t * h, axis=0, keepdims=True) + b5               # (1, blk)
    o_ref[...] = out.astype(o_ref.dtype)                             # lane-dense store


def pack_params(params):
    """Pack the 10 weight/bias arrays into one (88, 33) f32 slab (layout above)."""
    in_f = params["w1"].shape[1]
    P = jnp.zeros((_P_ROWS, _P_COLS), jnp.float32)
    P = P.at[_ROW_W1:_ROW_W1 + 8, 0:in_f].set(params["w1"])
    P = P.at[_ROW_W1:_ROW_W1 + 8, _BIAS_COL:_BIAS_COL + 1].set(params["b1"])
    P = P.at[_ROW_W2:_ROW_W2 + 16, 0:8].set(params["w2"])
    P = P.at[_ROW_W2:_ROW_W2 + 16, _BIAS_COL:_BIAS_COL + 1].set(params["b2"])
    P = P.at[_ROW_W3:_ROW_W3 + 32, 0:16].set(params["w3"])
    P = P.at[_ROW_W3:_ROW_W3 + 32, _BIAS_COL:_BIAS_COL + 1].set(params["b3"])
    P = P.at[_ROW_W4:_ROW_W4 + 16, 0:32].set(params["w4"])
    P = P.at[_ROW_W4:_ROW_W4 + 16, _BIAS_COL:_BIAS_COL + 1].set(params["b4"])
    P = P.at[_ROW_W5T:_ROW_W5T + 16, 0:1].set(params["w5"].T)
    P = P.at[_ROW_W5T:_ROW_W5T + 1, _BIAS_COL:_BIAS_COL + 1].set(params["b5"])
    return P


@functools.partial(jax.jit, static_argnames=("block_n",))
def features2_nn_forward(x, params, *, block_n=4096):
    """x: (N, in_features) float32. Returns (N, 1) float32."""
    n, in_f = x.shape
    assert in_f <= 32, "parameter slab layout assumes in_features <= 32"

    # Adaptive batch tile: minimize padding waste for ragged N; force >=2 grid steps
    # once N > 512 so the "parallel" grid axis can use both v7x TensorCores.
    n_steps = max(1, pl.cdiv(n, block_n))
    if n > 512:
        n_steps = max(n_steps, 2)
    blk = _round_up(pl.cdiv(n, n_steps), 256)
    n_pad = _round_up(n, blk)
    grid = n_pad // blk

    # Feature-major input: (in_features, n_pad), zero-padded tail columns (lane-local:
    # garbage in padded lanes cannot leak into valid lanes -- no cross-lane contraction).
    # TODO(synk): this transpose/pad could be fused into the pallas_call via
    # CompilerParams(allow_input_fusion=[0]); it is ~1% of runtime for large N today.
    xt = jnp.pad(x.astype(jnp.float32).T, ((0, 0), (0, n_pad - n)))
    P = pack_params(params)

    out_fm = pl.pallas_call(
        _mlp_kernel,
        out_shape=jax.ShapeDtypeStruct((1, n_pad), jnp.float32),
        grid_spec=pltpu.PrefetchScalarGridSpec(
            num_scalar_prefetch=0,
            grid=(grid,),
            in_specs=[
                pl.BlockSpec((in_f, blk), lambda i: (0, i)),        # x tile (batch on lanes)
                pl.BlockSpec((_P_ROWS, _P_COLS), lambda i: (0, 0)),  # param slab, DMA'd once
            ],
            out_specs=pl.BlockSpec((1, blk), lambda i: (0, i)),      # lane-dense output tile
        ),
        compiler_params=pltpu.CompilerParams(
            dimension_semantics=("parallel",)),
    )(xt, P)

    return out_fm[0, :n][:, None]  # (N, 1)


def init_params(key, in_features=2):
    """Matches the PyTorch module's init scheme (deterministic under JAX RNG).

    Hidden layers (linear_block): xavier_uniform_ weight, zero bias.
    Output layer (nn.Linear default): kaiming_uniform_(a=sqrt(5)) weight and
    U(-1/sqrt(fan_in), 1/sqrt(fan_in)) bias, both reduce to bound 1/sqrt(fan_in).
    Weights stored in PyTorch (out, in) layout; biases as (out, 1) columns.
    """
    dims = [(in_features, 8), (8, 16), (16, 32), (32, 16), (16, 1)]
    params = {}
    keys = jax.random.split(key, 2 * len(dims))
    for idx, (fan_in, fan_out) in enumerate(dims, start=1):
        kw, kb = keys[2 * (idx - 1)], keys[2 * (idx - 1) + 1]
        if idx < len(dims):
            bound = math.sqrt(6.0 / (fan_in + fan_out))  # xavier_uniform, gain=1
            w = jax.random.uniform(kw, (fan_out, fan_in), jnp.float32, -bound, bound)
            b = jnp.zeros((fan_out, 1), jnp.float32)
        else:
            bound = 1.0 / math.sqrt(fan_in)              # nn.Linear default init
            w = jax.random.uniform(kw, (fan_out, fan_in), jnp.float32, -bound, bound)
            b = jax.random.uniform(kb, (fan_out, 1), jnp.float32, -bound, bound)
        params[f"w{idx}"] = w
        params[f"b{idx}"] = b
    return params


def _reference_forward(x, params):
    """Pure-JAX f32 reference (batch-major, exact softplus/tanh Mish)."""
    def mish(v):
        return v * jnp.tanh(jax.nn.softplus(v))
    h = x
    for i in range(1, 5):
        h = mish(h @ params[f"w{i}"].T + params[f"b{i}"].T)
    return h @ params["w5"].T + params["b5"].T


if __name__ == "__main__":
    key = jax.random.PRNGKey(0)
    k_param, k_x1, k_x2 = jax.random.split(key, 3)
    params = init_params(k_param, in_features=2)

    # Small aligned batch: single grid step.
    x_small = jax.random.normal(k_x1, (256, 2), jnp.float32)
    out_small = jax.block_until_ready(features2_nn_forward(x_small, params))
    ref_small = _reference_forward(x_small, params)
    assert out_small.shape == (256, 1)
    assert jnp.allclose(out_small, ref_small, atol=5e-3, rtol=5e-3), "mismatch (small)"

    # Ragged batch: adaptive tiling -> 2-step "parallel" grid with 24 padded lanes.
    x_big = jax.random.normal(k_x2, (1000, 2), jnp.float32)
    out_big = jax.block_until_ready(features2_nn_forward(x_big, params))
    ref_big = _reference_forward(x_big, params)
    assert out_big.shape == (1000, 1)
    assert jnp.allclose(out_big, ref_big, atol=5e-3, rtol=5e-3), "mismatch (ragged)"

    # Small explicit tile: 4-step grid, exercises multi-step pipelining path.
    out_b4 = jax.block_until_ready(features2_nn_forward(x_big, params, block_n=256))
    assert jnp.allclose(out_b4, ref_big, atol=5e-3, rtol=5e-3), "mismatch (block_n=256)"

    print("KERNEL_OK")
</pallas_src>

<mosaic_0001>
module attributes {stable_mosaic.version = 11 : i64} {
  func.func @_mlp_kernel(%arg0: i32, %arg1: memref<2x256xf32, #tpu.memory_space<vmem>>, %arg2: memref<88x33xf32, #tpu.memory_space<vmem>>, %arg3: memref<1x256xf32, #tpu.memory_space<vmem>>) attributes {dimension_semantics = [#tpu.dimension_semantics<parallel>], iteration_bounds = array<i64: 1>, scalar_prefetch = 0 : i64, scratch_operands = 0 : i64, tpu.core_type = #tpu.core_type<tc>, window_params = [{transform_indices = @transform_0, window_bounds = array<i64: 2, 256>}, {pipeline_mode = #tpu.pipeline_mode<synchronous>, transform_indices = @transform_1, window_bounds = array<i64: 88, 33>}, {transform_indices = @transform_2, window_bounds = array<i64: 1, 256>}]} {
    %c0 = arith.constant 0 : index
    %c0_0 = arith.constant 0 : index
    %0 = vector.load %arg2[%c0, %c0_0] : memref<88x33xf32, #tpu.memory_space<vmem>>, vector<8x2xf32>
    %c0_1 = arith.constant 0 : index
    %c32 = arith.constant 32 : index
    %1 = vector.load %arg2[%c0_1, %c32] : memref<88x33xf32, #tpu.memory_space<vmem>>, vector<8x1xf32>
    %2 = vector.extract_strided_slice %0 {offsets = [0, 0], sizes = [8, 1], strides = [1, 1]} : vector<8x2xf32> to vector<8x1xf32>
    %c0_2 = arith.constant 0 : index
    %c0_3 = arith.constant 0 : index
    %3 = vector.load %arg1[%c0_2, %c0_3] : memref<2x256xf32, #tpu.memory_space<vmem>>, vector<1x256xf32>
    %4 = vector.broadcast %2 : vector<8x1xf32> to vector<8x256xf32>
    %5 = vector.broadcast %3 : vector<1x256xf32> to vector<8x256xf32>
    %6 = arith.mulf %4, %5 : vector<8x256xf32>
    %7 = vector.extract_strided_slice %0 {offsets = [0, 1], sizes = [8, 1], strides = [1, 1]} : vector<8x2xf32> to vector<8x1xf32>
    %c1 = arith.constant 1 : index
    %c0_4 = arith.constant 0 : index
    %8 = vector.load %arg1[%c1, %c0_4] : memref<2x256xf32, #tpu.memory_space<vmem>>, vector<1x256xf32>
    %9 = vector.broadcast %7 : vector<8x1xf32> to vector<8x256xf32>
    %10 = vector.broadcast %8 : vector<1x256xf32> to vector<8x256xf32>
    %11 = arith.mulf %9, %10 : vector<8x256xf32>
    %12 = arith.addf %6, %11 : vector<8x256xf32>
    %13 = vector.broadcast %1 : vector<8x1xf32> to vector<8x256xf32>
    %14 = arith.addf %12, %13 : vector<8x256xf32>
    %cst = arith.constant 2.000000e+01 : f32
    %15 = vector.broadcast %cst : f32 to vector<8x256xf32>
    %16 = arith.minimumf %14, %15 : vector<8x256xf32>
    %17 = math.exp %16 : vector<8x256xf32>
    %cst_5 = arith.constant 2.000000e+00 : f32
    %18 = vector.broadcast %cst_5 : f32 to vector<8x256xf32>
    %19 = arith.addf %17, %18 : vector<8x256xf32>
    %20 = arith.mulf %17, %19 : vector<8x256xf32>
    %21 = arith.mulf %14, %20 : vector<8x256xf32>
    %cst_6 = arith.constant 2.000000e+00 : f32
    %22 = vector.broadcast %cst_6 : f32 to vector<8x256xf32>
    %23 = arith.addf %20, %22 : vector<8x256xf32>
    %24 = tpu.reciprocal %23 {approx = true} : vector<8x256xf32> -> vector<8x256xf32>
    %25 = arith.mulf %21, %24 : vector<8x256xf32>
    %c8 = arith.constant 8 : index
    %c0_7 = arith.constant 0 : index
    %26 = vector.load %arg2[%c8, %c0_7] : memref<88x33xf32, #tpu.memory_space<vmem>>, vector<16x8xf32>
    %27 = arith.truncf %26 : vector<16x8xf32> to vector<16x8xbf16>
    %c8_8 = arith.constant 8 : index
    %c32_9 = arith.constant 32 : index
    %28 = vector.load %arg2[%c8_8, %c32_9] : memref<88x33xf32, #tpu.memory_space<vmem>>, vector<16x1xf32>
    %29 = arith.truncf %25 : vector<8x256xf32> to vector<8x256xbf16>
    %cst_10 = arith.constant dense<0.000000e+00> : vector<16x256xf32>
    %30 = tpu.matmul %27, %29, %cst_10 {dimension_numbers = #tpu.dot_dimension_numbers<[1], [0], [0], [1], [0, 0, 1, 1], [], []>} : vector<16x8xbf16>, vector<8x256xbf16>, vector<16x256xf32> -> vector<16x256xf32>
    %31 = vector.broadcast %28 : vector<16x1xf32> to vector<16x256xf32>
    %32 = arith.addf %30, %31 : vector<16x256xf32>
    %cst_11 = arith.constant 2.000000e+01 : f32
    %33 = vector.broadcast %cst_11 : f32 to vector<16x256xf32>
    %34 = arith.minimumf %32, %33 : vector<16x256xf32>
    %35 = math.exp %34 : vector<16x256xf32>
    %cst_12 = arith.constant 2.000000e+00 : f32
    %36 = vector.broadcast %cst_12 : f32 to vector<16x256xf32>
    %37 = arith.addf %35, %36 : vector<16x256xf32>
    %38 = arith.mulf %35, %37 : vector<16x256xf32>
    %39 = arith.mulf %32, %38 : vector<16x256xf32>
    %cst_13 = arith.constant 2.000000e+00 : f32
    %40 = vector.broadcast %cst_13 : f32 to vector<16x256xf32>
    %41 = arith.addf %38, %40 : vector<16x256xf32>
    %42 = tpu.reciprocal %41 {approx = true} : vector<16x256xf32> -> vector<16x256xf32>
    %43 = arith.mulf %39, %42 : vector<16x256xf32>
    %c24 = arith.constant 24 : index
    %c0_14 = arith.constant 0 : index
    %44 = vector.load %arg2[%c24, %c0_14] : memref<88x33xf32, #tpu.memory_space<vmem>>, vector<32x16xf32>
    %45 = arith.truncf %44 : vector<32x16xf32> to vector<32x16xbf16>
    %c24_15 = arith.constant 24 : index
    %c32_16 = arith.constant 32 : index
    %46 = vector.load %arg2[%c24_15, %c32_16] : memref<88x33xf32, #tpu.memory_space<vmem>>, vector<32x1xf32>
    %47 = arith.truncf %43 : vector<16x256xf32> to vector<16x256xbf16>
    %cst_17 = arith.constant dense<0.000000e+00> : vector<32x256xf32>
    %48 = tpu.matmul %45, %47, %cst_17 {dimension_numbers = #tpu.dot_dimension_numbers<[1], [0], [0], [1], [0, 0, 1, 1], [], []>} : vector<32x16xbf16>, vector<16x256xbf16>, vector<32x256xf32> -> vector<32x256xf32>
    %49 = vector.broadcast %46 : vector<32x1xf32> to vector<32x256xf32>
    %50 = arith.addf %48, %49 : vector<32x256xf32>
    %cst_18 = arith.constant 2.000000e+01 : f32
    %51 = vector.broadcast %cst_18 : f32 to vector<32x256xf32>
    %52 = arith.minimumf %50, %51 : vector<32x256xf32>
    %53 = math.exp %52 : vector<32x256xf32>
    %cst_19 = arith.constant 2.000000e+00 : f32
    %54 = vector.broadcast %cst_19 : f32 to vector<32x256xf32>
    %55 = arith.addf %53, %54 : vector<32x256xf32>
    %56 = arith.mulf %53, %55 : vector<32x256xf32>
    %57 = arith.mulf %50, %56 : vector<32x256xf32>
    %cst_20 = arith.constant 2.000000e+00 : f32
    %58 = vector.broadcast %cst_20 : f32 to vector<32x256xf32>
    %59 = arith.addf %56, %58 : vector<32x256xf32>
    %60 = tpu.reciprocal %59 {approx = true} : vector<32x256xf32> -> vector<32x256xf32>
    %61 = arith.mulf %57, %60 : vector<32x256xf32>
    %c56 = arith.constant 56 : index
    %c0_21 = arith.constant 0 : index
    %62 = vector.load %arg2[%c56, %c0_21] : memref<88x33xf32, #tpu.memory_space<vmem>>, vector<16x32xf32>
    %63 = arith.truncf %62 : vector<16x32xf32> to vector<16x32xbf16>
    %c56_22 = arith.constant 56 : index
    %c32_23 = arith.constant 32 : index
    %64 = vector.load %arg2[%c56_22, %c32_23] : memref<88x33xf32, #tpu.memory_space<vmem>>, vector<16x1xf32>
    %65 = arith.truncf %61 : vector<32x256xf32> to vector<32x256xbf16>
    %cst_24 = arith.constant dense<0.000000e+00> : vector<16x256xf32>
    %66 = tpu.matmul %63, %65, %cst_24 {dimension_numbers = #tpu.dot_dimension_numbers<[1], [0], [0], [1], [0, 0, 1, 1], [], []>} : vector<16x32xbf16>, vector<32x256xbf16>, vector<16x256xf32> -> vector<16x256xf32>
    %67 = vector.broadcast %64 : vector<16x1xf32> to vector<16x256xf32>
    %68 = arith.addf %66, %67 : vector<16x256xf32>
    %cst_25 = arith.constant 2.000000e+01 : f32
    %69 = vector.broadcast %cst_25 : f32 to vector<16x256xf32>
    %70 = arith.minimumf %68, %69 : vector<16x256xf32>
    %71 = math.exp %70 : vector<16x256xf32>
    %cst_26 = arith.constant 2.000000e+00 : f32
    %72 = vector.broadcast %cst_26 : f32 to vector<16x256xf32>
    %73 = arith.addf %71, %72 : vector<16x256xf32>
    %74 = arith.mulf %71, %73 : vector<16x256xf32>
    %75 = arith.mulf %68, %74 : vector<16x256xf32>
    %cst_27 = arith.constant 2.000000e+00 : f32
    %76 = vector.broadcast %cst_27 : f32 to vector<16x256xf32>
    %77 = arith.addf %74, %76 : vector<16x256xf32>
    %78 = tpu.reciprocal %77 {approx = true} : vector<16x256xf32> -> vector<16x256xf32>
    %79 = arith.mulf %75, %78 : vector<16x256xf32>
    %c72 = arith.constant 72 : index
    %c0_28 = arith.constant 0 : index
    %80 = vector.load %arg2[%c72, %c0_28] : memref<88x33xf32, #tpu.memory_space<vmem>>, vector<16x1xf32>
    %c72_29 = arith.constant 72 : index
    %c32_30 = arith.constant 32 : index
    %81 = vector.load %arg2[%c72_29, %c32_30] : memref<88x33xf32, #tpu.memory_space<vmem>>, vector<1x1xf32>
    %82 = vector.broadcast %80 : vector<16x1xf32> to vector<16x256xf32>
    %83 = arith.mulf %82, %79 : vector<16x256xf32>
    %cst_31 = arith.constant dense<0.000000e+00> : vector<256xf32>
    %84 = vector.multi_reduction <add>, %83, %cst_31 [0] : vector<16x256xf32> to vector<256xf32>
    %85 = vector.shape_cast %84 : vector<256xf32> to vector<1x256xf32>
    %86 = vector.broadcast %81 : vector<1x1xf32> to vector<1x256xf32>
    %87 = arith.addf %85, %86 : vector<1x256xf32>
    %c0_32 = arith.constant 0 : index
    %c0_33 = arith.constant 0 : index
    %88 = vector.load %arg3[%c0_32, %c0_33] : memref<1x256xf32, #tpu.memory_space<vmem>>, vector<1x256xf32>
    tpu.vector_store %arg3[%c0_32, %c0_33], %87 {strides = array<i32>} : memref<1x256xf32, #tpu.memory_space<vmem>>, vector<1x256xf32>,
    return
  }
  func.func @transform_0(%arg0: i32) -> (i32, i32) {
    %c0_i32 = arith.constant 0 : i32
    %c0_i32_0 = arith.constant 0 : i32
    return %c0_i32, %arg0 : i32, i32
  }
  func.func @transform_1(%arg0: i32) -> (i32, i32) {
    %c0_i32 = arith.constant 0 : i32
    %c0_i32_0 = arith.constant 0 : i32
    %c0_i32_1 = arith.constant 0 : i32
    return %c0_i32, %c0_i32_0 : i32, i32
  }
  func.func @transform_2(%arg0: i32) -> (i32, i32) {
    %c0_i32 = arith.constant 0 : i32
    %c0_i32_0 = arith.constant 0 : i32
    return %c0_i32, %arg0 : i32, i32
  }
}

</mosaic_0001>

<llo_original>
// kernel: features2_nn_forward.1
$region0: #{features2_nn_forward.1}
  #allocation0 [shape = 'u32[]', space=smem, size = 0x4, offset = 0x4, fixed_abs, tag = 'smem constant byte address 0x4 - core index']
  #allocation1 [shape = 'u32[72,128]{1,0:T(1,128)}', space=vmem, size = 0x9000, scoped, tag = 'internal scratch']
  %s0 = inlined_call_operand.vmem [shape: f32[2,256], index: 0, kind: input, shape index: {}]
  %s1 = inlined_call_operand.vmem [shape: f32[88,33], index: 1, kind: input, shape index: {}]
  %s2 = inlined_call_operand.hbm [shape: f32[1,256], index: 2, kind: output, shape index: {}]
  %s3 = sld [smem:[#allocation0]]
  $region18: #{features2_nn_forward.1} parent=0
    _
  %s5 = ssub.s32 1, %s3
  %s6 = scalar_select 0, %s5, %s3
  $region1: #{features2_nn_forward.1} parent=0
    #allocation2 [shape = 'u8[1024]{0}', space=vmem, size = 0x400, scoped, tag = 'output window, operand 0, single buffered']
    #allocation3 [shape = 's32[1]{0}', space=sflag, size = 0x4, scoped, tag = 'scoped memory for features2_nn_forward.1']
    %7 = vsyncpa [#allocation3], 0
    // Predicated region
    $region2: #{features2_nn_forward.1} parent=1 // pred_check
      _
    $region3: #{features2_nn_forward.1} parent=1 // pred_check_branch
      %9 = sbr.rel (0) target = $region5
    $region4: #{features2_nn_forward.1} parent=1 // pred_region
      _
    $region5: #{features2_nn_forward.1} parent=1 // pred_fallthru
      _
    // Predicated region
    $region6: #{features2_nn_forward.1} parent=1 // pred_check
      _
    $region7: #{features2_nn_forward.1} parent=1 // pred_check_branch
      %11 = sbr.rel (0) target = $region9
    $region8: #{features2_nn_forward.1} parent=1 // pred_region
      _
    $region9: #{features2_nn_forward.1} parent=1 // pred_fallthru
      _
    %v13 = vld [vmem:[%s1] sm:$0xff]
    %v14 = vld [vmem:[%s0] ss:$2 sm:$0x3]
    %16 = vset.pattern.permute.xlu0 0
    %17 = vperm.xlu0 %16, %v13
    %v18 = vpop.permute.xlu0 %17
    %v21 = vperm.slane %v14, 0
    %v22 = vperm.slane %v14, 1
    %v25 = vmul.f32 %v18, %v21
    %v26 = vmul.f32 %v18, %v22
    %s27 = scalar_lea.vmem %s0, 1
    %v28 = vld [vmem:[%s27] ss:$2 sm:$0x3]
    %29 = vset.pattern.permute.xlu0 1
    %30 = vperm.xlu0 %29, %v13
    %v31 = vpop.permute.xlu0 %30
    %v34 = vperm.slane %v28, 0
    %v35 = vperm.slane %v28, 1
    %v38 = vmul.f32 %v31, %v34
    %v39 = vmul.f32 %v31, %v35
    %v40 = vadd.f32 %v25, %v38
    %v41 = vadd.f32 %v26, %v39
    %42 = vset.pattern.permute.xlu0 32
    %43 = vperm.xlu0 %42, %v13
    %v44 = vpop.permute.xlu0 %43
    %v46 = vadd.f32 %v40, %v44
    %v47 = vadd.f32 %v41, %v44
    %v48 = vmin.f32 %v46, 20.0
    %v49 = vmin.f32 %v47, 20.0
    %v50 = vmul.f32 %v48, 1.442695
    %v51 = vpow.pop %v50
    %v52 = vmul.f32 %v49, 1.442695
    %v53 = vpow.pop %v52
    %v54 = vadd.f32 %v51, 2.0
    %v55 = vadd.f32 %v53, 2.0
    %v56 = vmul.f32 %v51, %v54
    %v57 = vmul.f32 %v53, %v55
    %v58 = vmul.f32 %v46, %v56
    %v59 = vmul.f32 %v47, %v57
    %v60 = vadd.f32 %v56, 2.0
    %v61 = vadd.f32 %v57, 2.0
    %v62 = vrcp.pop %v60
    %v63 = vrcp.pop %v61
    %v64 = vmul.f32 %v58, %v62
    %v65 = vmul.f32 %v59, %v63
    %v66 = vld [vmem:[%s1 + $0x8] sm:$0xff]
    %v67 = vld [vmem:[%s1 + $0x10] sm:$0xff]
    %v68 = vpack.c.bf16 %v67, %v66
    %v69 = vpack.c.bf16 %v64, %v64
    %v70 = vpack.c.bf16 %v65, %v65
    %72 = vset.pattern.permute.xlu0 32
    %73 = vperm.xlu0 %72, %v66
    %v74 = vpop.permute.xlu0 %73
    %77 = vset.pattern.permute.xlu0 32
    %78 = vperm.xlu0 %77, %v67
    %v79 = vpop.permute.xlu0 %78
    %vm81 = vcmask 64512
    %v83 = vsel %vm81, %v68, 0
    %vm85 = vcmask 1043456
    %v87 = vsel %vm85, %v69, 0
    %v90 = vsel %vm85, %v70, 0
    %92 = vmatpush.bf16.msra.mxu0 0
    %93 = vmatpush.bf16.msra.mxu0 0
    %94 = vmatpush.bf16.msra.mxu0 0
    %95 = vmatpush.bf16.msra.mxu0 0
    %96 = vmatpush.bf16.msra.mxu0 0
    %97 = vmatpush.bf16.msra.mxu0 0
    %98 = vmatpush.bf16.msra.mxu0 0
    %99 = vmatpush.bf16.msra.mxu0 %v87
    %100 = vmatmul.bf16.gmra.mxu0 %v83
    %v101 = vpop.f32.mrf.mxu0
    %v102 = vadd.f32 %v74, %v101
    %v103 = vpop.f32.mrf.mxu0
    %v104 = vadd.f32 %v79, %v103
    %105 = vdwg.mxu0
    %106 = vmatpush.bf16.msra.mxu0 0
    %107 = vmatpush.bf16.msra.mxu0 0
    %108 = vmatpush.bf16.msra.mxu0 0
    %109 = vmatpush.bf16.msra.mxu0 0
    %110 = vmatpush.bf16.msra.mxu0 0
    %111 = vmatpush.bf16.msra.mxu0 0
    %112 = vmatpush.bf16.msra.mxu0 0
    %113 = vmatpush.bf16.msra.mxu0 %v90
    %114 = vmatmul.bf16.gmra.mxu0 %v83
    %v115 = vpop.f32.mrf.mxu0
    %v116 = vadd.f32 %v74, %v115
    %v117 = vpop.f32.mrf.mxu0
    %v118 = vadd.f32 %v79, %v117
    %119 = vdwg.mxu0
    %v120 = vmin.f32 %v102, 20.0
    %v121 = vmin.f32 %v116, 20.0
    %v122 = vmin.f32 %v104, 20.0
    %v123 = vmin.f32 %v118, 20.0
    %v124 = vmul.f32 %v120, 1.442695
    %v125 = vpow.pop %v124
    %v126 = vmul.f32 %v121, 1.442695
    %v127 = vpow.pop %v126
    %v128 = vmul.f32 %v122, 1.442695
    %v129 = vpow.pop %v128
    %v130 = vmul.f32 %v123, 1.442695
    %v131 = vpow.pop %v130
    %v132 = vadd.f32 %v125, 2.0
    %v133 = vadd.f32 %v127, 2.0
    %v134 = vadd.f32 %v129, 2.0
    %v135 = vadd.f32 %v131, 2.0
    %v136 = vmul.f32 %v125, %v132
    %v137 = vmul.f32 %v127, %v133
    %v138 = vmul.f32 %v129, %v134
    %v139 = vmul.f32 %v131, %v135
    %v140 = vmul.f32 %v102, %v136
    %v141 = vmul.f32 %v116, %v137
    %v142 = vmul.f32 %v104, %v138
    %v143 = vmul.f32 %v118, %v139
    %v144 = vadd.f32 %v136, 2.0
    %v145 = vadd.f32 %v137, 2.0
    %v146 = vadd.f32 %v138, 2.0
    %v147 = vadd.f32 %v139, 2.0
    %v148 = vrcp.pop %v144
    %v149 = vrcp.pop %v145
    %v150 = vrcp.pop %v146
    %v151 = vrcp.pop %v147
    %v152 = vmul.f32 %v140, %v148
    %v153 = vmul.f32 %v141, %v149
    %v154 = vmul.f32 %v142, %v150
    %v155 = vmul.f32 %v143, %v151
    %v156 = vld [vmem:[%s1 + $0x18] sm:$0xff]
    %v157 = vld [vmem:[%s1 + $0x20] sm:$0xff]
    %v158 = vld [vmem:[%s1 + $0x28] sm:$0xff]
    %v159 = vld [vmem:[%s1 + $0x30] sm:$0xff]
    %v160 = vpack.c.bf16 %v157, %v156
    %v161 = vpack.c.bf16 %v159, %v158
    %v162 = vpack.c.bf16 %v154, %v152
    %v163 = vpack.c.bf16 %v155, %v153
    %165 = vset.pattern.permute.xlu0 32
    %166 = vperm.xlu0 %165, %v156
    %v167 = vpop.permute.xlu0 %166
    %170 = vset.pattern.permute.xlu0 32
    %171 = vperm.xlu0 %170, %v157
    %v172 = vpop.permute.xlu0 %171
    %175 = vset.pattern.permute.xlu0 32
    %176 = vperm.xlu0 %175, %v158
    %v177 = vpop.permute.xlu0 %176
    %180 = vset.pattern.permute.xlu0 32
    %181 = vperm.xlu0 %180, %v159
    %v182 = vpop.permute.xlu0 %181
    %vm184 = vcmask 130048
    %v186 = vsel %vm184, %v160, 0
    %v189 = vsel %vm184, %v161, 0
    %191 = vmatpush.bf16.msra.mxu0 0
    %192 = vmatpush.bf16.msra.mxu0 0
    %193 = vmatpush.bf16.msra.mxu0 0
    %194 = vmatpush.bf16.msra.mxu0 0
    %195 = vmatpush.bf16.msra.mxu0 0
    %196 = vmatpush.bf16.msra.mxu0 0
    %197 = vmatpush.bf16.msra.mxu0 0
    %198 = vmatpush.bf16.msra.mxu0 %v162
    %199 = vmatmul.bf16.gmra.mxu0 %v186
    %v200 = vpop.f32.mrf.mxu0
    %v201 = vadd.f32 %v167, %v200
    %v202 = vpop.f32.mrf.mxu0
    %v203 = vadd.f32 %v172, %v202
    %204 = vmatmul.bf16.gmra.mxu0 %v189
    %v205 = vpop.f32.mrf.mxu0
    %v206 = vadd.f32 %v177, %v205
    %v207 = vpop.f32.mrf.mxu0
    %v208 = vadd.f32 %v182, %v207
    %209 = vdwg.mxu0
    %210 = vmatpush.bf16.msra.mxu0 0
    %211 = vmatpush.bf16.msra.mxu0 0
    %212 = vmatpush.bf16.msra.mxu0 0
    %213 = vmatpush.bf16.msra.mxu0 0
    %214 = vmatpush.bf16.msra.mxu0 0
    %215 = vmatpush.bf16.msra.mxu0 0
    %216 = vmatpush.bf16.msra.mxu0 0
    %217 = vmatpush.bf16.msra.mxu0 %v163
    %218 = vmatmul.bf16.gmra.mxu0 %v186
    %v219 = vpop.f32.mrf.mxu0
    %v220 = vadd.f32 %v167, %v219
    %v221 = vpop.f32.mrf.mxu0
    %v222 = vadd.f32 %v172, %v221
    %223 = vmatmul.bf16.gmra.mxu0 %v189
    %v224 = vpop.f32.mrf.mxu0
    %v225 = vadd.f32 %v177, %v224
    %v226 = vpop.f32.mrf.mxu0
    %v227 = vadd.f32 %v182, %v226
    %228 = vdwg.mxu0
    %v229 = vmin.f32 %v201, 20.0
    %v230 = vmin.f32 %v220, 20.0
    %v231 = vmin.f32 %v203, 20.0
    %v232 = vmin.f32 %v222, 20.0
    %v233 = vmin.f32 %v206, 20.0
    %v234 = vmin.f32 %v225, 20.0
    %v235 = vmin.f32 %v208, 20.0
    %v236 = vmin.f32 %v227, 20.0
    %v237 = vmul.f32 %v229, 1.442695
    %v238 = vpow.pop %v237
    %v239 = vmul.f32 %v230, 1.442695
    %v240 = vpow.pop %v239
    %v241 = vmul.f32 %v231, 1.442695
    %v242 = vpow.pop %v241
    %v243 = vmul.f32 %v232, 1.442695
    %v244 = vpow.pop %v243
    %v245 = vmul.f32 %v233, 1.442695
    %v246 = vpow.pop %v245
    %v247 = vmul.f32 %v234, 1.442695
    %v248 = vpow.pop %v247
    %v249 = vmul.f32 %v235, 1.442695
    %v250 = vpow.pop %v249
    %v251 = vmul.f32 %v236, 1.442695
    %v252 = vpow.pop %v251
    %v253 = vadd.f32 %v238, 2.0
    %v254 = vadd.f32 %v240, 2.0
    %v255 = vadd.f32 %v242, 2.0
    %v256 = vadd.f32 %v244, 2.0
    %v257 = vadd.f32 %v246, 2.0
    %v258 = vadd.f32 %v248, 2.0
    %v259 = vadd.f32 %v250, 2.0
    %v260 = vadd.f32 %v252, 2.0
    %v261 = vmul.f32 %v238, %v253
    %v262 = vmul.f32 %v240, %v254
    %v263 = vmul.f32 %v242, %v255
    %v264 = vmul.f32 %v244, %v256
    %v265 = vmul.f32 %v246, %v257
    %v266 = vmul.f32 %v248, %v258
    %v267 = vmul.f32 %v250, %v259
    %v268 = vmul.f32 %v252, %v260
    %v269 = vmul.f32 %v201, %v261
    %v270 = vmul.f32 %v220, %v262
    %v271 = vmul.f32 %v203, %v263
    %v272 = vmul.f32 %v222, %v264
    %v273 = vmul.f32 %v206, %v265
    %v274 = vmul.f32 %v225, %v266
    %v275 = vmul.f32 %v208, %v267
    %v276 = vmul.f32 %v227, %v268
    %v277 = vadd.f32 %v261, 2.0
    %v278 = vadd.f32 %v262, 2.0
    %v279 = vadd.f32 %v263, 2.0
    %v280 = vadd.f32 %v264, 2.0
    %v281 = vadd.f32 %v265, 2.0
    %v282 = vadd.f32 %v266, 2.0
    %v283 = vadd.f32 %v267, 2.0
    %v284 = vadd.f32 %v268, 2.0
    %v285 = vrcp.pop %v277
    %v286 = vrcp.pop %v278
    %v287 = vrcp.pop %v279
    %v288 = vrcp.pop %v280
    %v289 = vrcp.pop %v281
    %v290 = vrcp.pop %v282
    %v291 = vrcp.pop %v283
    %v292 = vrcp.pop %v284
    %v293 = vmul.f32 %v269, %v285
    %v294 = vmul.f32 %v270, %v286
    %v295 = vmul.f32 %v271, %v287
    %v296 = vmul.f32 %v272, %v288
    %v297 = vmul.f32 %v273, %v289
    %v298 = vmul.f32 %v274, %v290
    %v299 = vmul.f32 %v275, %v291
    %v300 = vmul.f32 %v276, %v292
    %v301 = vld [vmem:[%s1 + $0x38] sm:$0xff]
    %v302 = vld [vmem:[%s1 + $0x40] sm:$0xff]
    %v303 = vpack.c.bf16 %v302, %v301
    %v304 = vpack.c.bf16 %v295, %v293
    %v305 = vpack.c.bf16 %v296, %v294
    %v306 = vpack.c.bf16 %v299, %v297
    %v307 = vpack.c.bf16 %v300, %v298
    %309 = vset.pattern.permute.xlu0 32
    %310 = vperm.xlu0 %309, %v301
    %v311 = vpop.permute.xlu0 %310
    %314 = vset.pattern.permute.xlu0 32
    %315 = vperm.xlu0 %314, %v302
    %v316 = vpop.permute.xlu0 %315
    %vm318 = vcmask 261120
    %v320 = vsel %vm318, %v303, 0
    %322 = vmatpush.bf16.msra.mxu0 0
    %323 = vmatpush.bf16.msra.mxu0 0
    %324 = vmatpush.bf16.msra.mxu0 0
    %325 = vmatpush.bf16.msra.mxu0 0
    %326 = vmatpush.bf16.msra.mxu0 0
    %327 = vmatpush.bf16.msra.mxu0 0
    %328 = vmatpush.bf16.msra.mxu0 %v306
    %329 = vmatpush.bf16.msra.mxu0 %v304
    %330 = vmatmul.bf16.gmra.mxu0 %v320
    %v331 = vpop.f32.mrf.mxu0
    %v332 = vadd.f32 %v311, %v331
    %v333 = vpop.f32.mrf.mxu0
    %v334 = vadd.f32 %v316, %v333
    %335 = vdwg.mxu0
    %336 = vmatpush.bf16.msra.mxu0 0
    %337 = vmatpush.bf16.msra.mxu0 0
    %338 = vmatpush.bf16.msra.mxu0 0
    %339 = vmatpush.bf16.msra.mxu0 0
    %340 = vmatpush.bf16.msra.mxu0 0
    %341 = vmatpush.bf16.msra.mxu0 0
    %342 = vmatpush.bf16.msra.mxu0 %v307
    %343 = vmatpush.bf16.msra.mxu0 %v305
    %344 = vmatmul.bf16.gmra.mxu0 %v320
    %v345 = vpop.f32.mrf.mxu0
    %v346 = vadd.f32 %v311, %v345
    %v347 = vpop.f32.mrf.mxu0
    %v348 = vadd.f32 %v316, %v347
    %349 = vdwg.mxu0
    %v350 = vmin.f32 %v332, 20.0
    %v351 = vmin.f32 %v346, 20.0
    %v352 = vmin.f32 %v334, 20.0
    %v353 = vmin.f32 %v348, 20.0
    %v354 = vmul.f32 %v350, 1.442695
    %v355 = vpow.pop %v354
    %v356 = vmul.f32 %v351, 1.442695
    %v357 = vpow.pop %v356
    %v358 = vmul.f32 %v352, 1.442695
    %v359 = vpow.pop %v358
    %v360 = vmul.f32 %v353, 1.442695
    %v361 = vpow.pop %v360
    %v362 = vadd.f32 %v355, 2.0
    %v363 = vadd.f32 %v357, 2.0
    %v364 = vadd.f32 %v359, 2.0
    %v365 = vadd.f32 %v361, 2.0
    %v366 = vmul.f32 %v355, %v362
    %v367 = vmul.f32 %v357, %v363
    %v368 = vmul.f32 %v359, %v364
    %v369 = vmul.f32 %v361, %v365
    %v370 = vmul.f32 %v332, %v366
    %v371 = vmul.f32 %v346, %v367
    %v372 = vmul.f32 %v334, %v368
    %v373 = vmul.f32 %v348, %v369
    %v374 = vadd.f32 %v366, 2.0
    %v375 = vadd.f32 %v367, 2.0
    %v376 = vadd.f32 %v368, 2.0
    %v377 = vadd.f32 %v369, 2.0
    %v378 = vrcp.pop %v374
    %v379 = vrcp.pop %v375
    %v380 = vrcp.pop %v376
    %v381 = vrcp.pop %v377
    %v382 = vmul.f32 %v370, %v378
    %v383 = vmul.f32 %v371, %v379
    %v384 = vmul.f32 %v372, %v380
    %v385 = vmul.f32 %v373, %v381
    %v386 = vld [vmem:[%s1 + $0x48] sm:$0xff]
    %v387 = vld [vmem:[%s1 + $0x50] sm:$0xff]
    %v388 = vld [vmem:[%s1 + $0x48] sm:$0x1]
    %390 = vset.pattern.permute.xlu0 0
    %391 = vperm.xlu0 %390, %v386
    %v392 = vpop.permute.xlu0 %391
    %395 = vset.pattern.permute.xlu0 0
    %396 = vperm.xlu0 %395, %v387
    %v397 = vpop.permute.xlu0 %396
    %v399 = vmul.f32 %v392, %v382
    %v400 = vmul.f32 %v392, %v383
    %v401 = vmul.f32 %v397, %v384
    %v402 = vmul.f32 %v397, %v385
    %v403 = vadd.f32 %v399, %v401
    %v404 = vrot.slane %v403, 4
    %v405 = vadd.f32 %v403, %v404
    %v406 = vrot.slane %v405, 2
    %v407 = vadd.f32 %v405, %v406
    %v408 = vrot.slane %v407, 1
    %v409 = vadd.f32 %v407, %v408
    %v410 = vadd.f32 %v400, %v402
    %v411 = vrot.slane %v410, 4
    %v412 = vadd.f32 %v410, %v411
    %v413 = vrot.slane %v412, 2
    %v414 = vadd.f32 %v412, %v413
    %v415 = vrot.slane %v414, 1
    %v416 = vadd.f32 %v414, %v415
    %418 = vset.pattern.permute.xlu0 32
    %419 = vperm.xlu0 %418, %v388
    %v420 = vpop.permute.xlu0 %419
    %v422 = vadd.f32 %v409, %v420
    %v423 = vadd.f32 %v416, %v420
    %v426 = vrot.slane %v423, 7
    %vm427 = vcmask 1040384
    %v428 = vsel %vm427, %v422, %v426
    %v430 = vlaneseq
    %vm431 = vcmp.ge.s32.totalorder %v430, 0
    %vm432 = vcmp.lt.s32.totalorder %v430, 256
    %vm433 = vmand %vm431, %vm432
    %434 = vst.msk [vmem:[#allocation2] sm:$0x3] %vm433, %v428
    // Predicated region
    $region10: #{features2_nn_forward.1} parent=1 // pred_check
      _
    $region11: #{features2_nn_forward.1} parent=1 // pred_check_branch
      %436 = sbr.rel (0) target = $region13
    $region12: #{features2_nn_forward.1} parent=1 // pred_region
      %438 = vsyncadd [#allocation3], 0
      %s440 = sshll.u32 [#allocation2], 4
      %s441 = int_to_ptr.vmem [resolvable:$true] %s440
      %s442 = sshll.u32 %s2, 4
      %s443 = int_to_ptr.hbm [resolvable:$true] %s442
      %445 = dma.vmem_to_hbm [thread:$0]  %s441, 32, %s443, [#allocation3]
    $region13: #{features2_nn_forward.1} parent=1 // pred_fallthru
      _
    // Predicated region
    $region14: #{features2_nn_forward.1} parent=1 // pred_check
      _
    $region15: #{features2_nn_forward.1} parent=1 // pred_check_branch
      %447 = sbr.rel (0) target = $region17
    $region16: #{features2_nn_forward.1} parent=1 // pred_region
      %449 = dma.done [#allocation3], 32
    $region17: #{features2_nn_forward.1} parent=1 // pred_fallthru
      _
    %450 = vsyncpa [#allocation3], 1

</llo_original>
